<compile_context>
chip_gen: v7x
topology: tpu7x:2x2x1
jax: 0.10.0
libtpu: 0.0.40
codegen_flags: <defaults>
</compile_context>

<pallas_src>
import functools

import jax
import jax.numpy as jnp
from jax import lax
from jax.experimental import pallas as pl
from jax.experimental.pallas import tpu as pltpu


_TILE_VMEM_BUDGET = 24 * 1024 * 1024   # budget for the double-buffered tile plan
_VMEM_LIMIT_FLOOR = 32 * 1024 * 1024
_VMEM_LIMIT_CAP = 48 * 1024 * 1024     # stay well inside v7x's 64 MiB physical VMEM


def _cdiv(a: int, b: int) -> int:
    return (a + b - 1) // b


def _round_up(x: int, m: int) -> int:
    return ((x + m - 1) // m) * m


def _make_linear_kernel(n_k_steps: int, k_rem: int, accumulate_in_output: bool):
    """Build the kernel body.

    n_k_steps            : static number of K grid steps.
    k_rem                : K % tk; 0 means every K block is full (no masking).
    accumulate_in_output : f32 output -> accumulate directly into o_ref
                           (no scratch); otherwise use an f32 VMEM scratch.
    """

    def _dot(x, w):
        # x: (tm, tk), w: (tk, tn) -> (tm, tn); MXU-native (K, N) RHS, f32 acc.
        return lax.dot_general(
            x, w, dimension_numbers=(((1,), (0,)), ((), ())),
            preferred_element_type=jnp.float32)

    def _masked_dot(x_ref, w_ref):
        # Zero the K-tail garbage of the final partial K block.  Only ever
        # executed on the last K step, and only when tk does not divide K.
        kx = lax.broadcasted_iota(jnp.int32, x_ref.shape, 1)
        kw = lax.broadcasted_iota(jnp.int32, w_ref.shape, 0)
        x = jnp.where(kx < k_rem, x_ref[...], 0)
        w = jnp.where(kw < k_rem, w_ref[...], 0)
        return _dot(x, w)

    def _accumulate(x_ref, w_ref, add):
        k = pl.program_id(2)
        if k_rem == 0:
            add(_dot(x_ref[...], w_ref[...]))
        else:
            @pl.when(k < n_k_steps - 1)
            def _():
                add(_dot(x_ref[...], w_ref[...]))

            @pl.when(k == n_k_steps - 1)
            def _():
                add(_masked_dot(x_ref, w_ref))

    if accumulate_in_output:
        def kernel(x_ref, w_ref, b_ref, o_ref):
            k = pl.program_id(2)

            @pl.when(k == 0)
            def _():
                # The output block's index is constant in k, so it stays
                # resident in VMEM across the K axis and doubles as the
                # accumulator; seed it with the bias.
                o_ref[...] = jnp.broadcast_to(
                    b_ref[...].astype(o_ref.dtype), o_ref.shape)

            def add(v):
                o_ref[...] += v

            _accumulate(x_ref, w_ref, add)

        return kernel

    def kernel(x_ref, w_ref, b_ref, o_ref, acc_ref):
        k = pl.program_id(2)

        @pl.when(k == 0)
        def _():
            acc_ref[...] = jnp.zeros_like(acc_ref)

        def add(v):
            acc_ref[...] += v

        _accumulate(x_ref, w_ref, add)

        @pl.when(k == n_k_steps - 1)
        def _():
            # Bias add + downcast once, in the epilogue only.
            o_ref[...] = (acc_ref[...] + b_ref[...].astype(jnp.float32)
                          ).astype(o_ref.dtype)

    return kernel


def _plan_vmem_bytes(tm_, tn_, tk_, itemsize, separate_acc):
    # Double-buffered x / w / out / bias tiles + optional f32 accumulator.
    tiles = 2 * (tm_ * tk_ + tk_ * tn_ + tm_ * tn_ + tn_) * itemsize
    acc = tm_ * tn_ * 4 if separate_acc else 0
    return tiles + acc


def _choose_tiles(m, n, k, itemsize, separate_acc, tm, tn, tk):
    # Full-extent blocks for dims smaller than the requested tile: always a
    # legal block shape and never requires a padding copy.
    tk_eff = k if k <= tk else tk
    tn_eff = n if n <= tn else tn

    if m <= tm:
        tm_eff = m
    elif _plan_vmem_bytes(m, tn_eff, tk_eff, itemsize,
                          separate_acc) <= _TILE_VMEM_BUDGET:
        # Grow tm to cover all of M: the weight (the dominant HBM term of a
        # Linear layer) is then streamed from HBM exactly once per call.
        tm_eff = m
    else:
        tm_eff = tm

    # v7x megacore: keep >= 2 parallel (i, j) tiles when N is big enough so
    # both TensorCores get work; prefer splitting N over shrinking tm.
    if _cdiv(m, tm_eff) * _cdiv(n, tn_eff) == 1 and n >= 512:
        tn_eff = _round_up(_cdiv(n, 2), 256)

    return tm_eff, tn_eff, tk_eff


@functools.partial(jax.jit, static_argnames=("tm", "tn", "tk"))
def linear_forward(x, w_kn, bias, *, tm=512, tn=512, tk=1024):
    """y = x @ w_kn + bias.

    x    : [..., input_size]
    w_kn : [input_size, output_size] — nn.Linear's weight transposed ONCE at
           parameter-init time (see `Linear` below); no per-call re-layout.
    bias : [output_size]
    """
    in_size, out_size = w_kn.shape
    lead_shape = x.shape[:-1]
    x2d = x.reshape(-1, in_size)
    m, k, n = x2d.shape[0], in_size, out_size

    out_dtype = x.dtype
    accumulate_in_output = out_dtype == jnp.float32
    itemsize = jnp.dtype(x.dtype).itemsize

    tm_eff, tn_eff, tk_eff = _choose_tiles(
        m, n, k, itemsize, not accumulate_in_output, tm, tn, tk)

    grid = (_cdiv(m, tm_eff), _cdiv(n, tn_eff), _cdiv(k, tk_eff))
    n_k_steps = grid[2]
    k_rem = k % tk_eff  # valid columns of the last (partial) K block; 0 = full

    kernel = _make_linear_kernel(n_k_steps, k_rem, accumulate_in_output)
    scratch_shapes = []
    if not accumulate_in_output:
        scratch_shapes = [pltpu.VMEM((tm_eff, tn_eff), jnp.float32)]

    plan_bytes = _plan_vmem_bytes(tm_eff, tn_eff, tk_eff, itemsize,
                                  not accumulate_in_output)
    vmem_limit = min(max(int(1.25 * plan_bytes) + (2 << 20), _VMEM_LIMIT_FLOOR),
                     _VMEM_LIMIT_CAP)

    cost = pl.CostEstimate(
        flops=2 * m * n * k,
        transcendentals=0,
        bytes_accessed=(m * k + k * n + n + m * n) * itemsize)

    bias2d = bias.reshape(1, n)

    out2d = pl.pallas_call(
        kernel,
        out_shape=jax.ShapeDtypeStruct((m, n), out_dtype),
        grid_spec=pltpu.PrefetchScalarGridSpec(
            num_scalar_prefetch=0,
            grid=grid,
            in_specs=[
                pl.BlockSpec((tm_eff, tk_eff), lambda i, j, kk: (i, kk)),  # x
                pl.BlockSpec((tk_eff, tn_eff), lambda i, j, kk: (kk, j)),  # W^T (K,N)
                pl.BlockSpec((1, tn_eff), lambda i, j, kk: (0, j)),        # bias
            ],
            out_specs=pl.BlockSpec((tm_eff, tn_eff), lambda i, j, kk: (i, j)),
            scratch_shapes=scratch_shapes,
        ),
        compiler_params=pltpu.CompilerParams(
            dimension_semantics=("parallel", "parallel", "arbitrary"),
            vmem_limit_bytes=vmem_limit,
        ),
        cost_estimate=cost,
    )(x2d, w_kn, bias2d)

    return out2d.reshape(*lead_shape, n)


class Linear:
    """Pallas-backed equivalent of the PyTorch `Linear` module."""

    def __init__(self, input_size, output_size, *, key, dtype=jnp.float32):
        kw, kb = jax.random.split(key)
        bound = 1.0 / (input_size ** 0.5)
        w_pt = jax.random.uniform(kw, (output_size, input_size),
                                  minval=-bound, maxval=bound, dtype=dtype)
        self.bias = jax.random.uniform(kb, (output_size,),
                                       minval=-bound, maxval=bound, dtype=dtype)
        # One-time re-layout to the MXU-native (K, N) RHS layout at init —
        # the jitted forward never copies/transposes the parameter again.
        self.w_kn = jnp.asarray(w_pt.T)
        self.w_pt = w_pt  # kept only for the reference check below

    def __call__(self, x):
        return linear_forward(x, self.w_kn, self.bias)


if __name__ == "__main__":
    key = jax.random.PRNGKey(0)

    # --- Check 1: small shapes from the module spec (full-extent tiles) ---
    batch, seq, input_size, output_size = 2, 8, 32, 16
    key, kx, kmod = jax.random.split(key, 3)
    x = jax.random.normal(kx, (batch, seq, input_size), dtype=jnp.float32)
    layer = Linear(input_size, output_size, key=kmod)
    y = layer(x)
    jax.block_until_ready(y)
    y_ref = x @ layer.w_pt.T + layer.bias
    assert y.shape == (batch, seq, output_size)
    assert jnp.allclose(y, y_ref, atol=1e-5, rtol=1e-5)

    # --- Check 2: K accumulation with a partial (masked) last K block and a
    #     non-128-padded N handled without any jnp.pad / output slicing ---
    b2, s2, in2, out2 = 2, 8, 1536, 384
    key, kx2, kmod2 = jax.random.split(key, 3)
    x2 = jax.random.normal(kx2, (b2, s2, in2), dtype=jnp.float32)
    layer2 = Linear(in2, out2, key=kmod2)
    y2 = layer2(x2)
    jax.block_until_ready(y2)
    y2_ref = x2 @ layer2.w_pt.T + layer2.bias
    assert y2.shape == (b2, s2, out2)
    assert jnp.allclose(y2, y2_ref, atol=1e-4, rtol=1e-4)

    print("KERNEL_OK")
</pallas_src>

<mosaic_0001>
module attributes {stable_mosaic.version = 11 : i64} {
  func.func @kernel(%arg0: i32, %arg1: i32, %arg2: i32, %arg3: memref<16x32xf32, #tpu.memory_space<vmem>>, %arg4: memref<32x16xf32, #tpu.memory_space<vmem>>, %arg5: memref<1x16xf32, #tpu.memory_space<vmem>>, %arg6: memref<16x16xf32, #tpu.memory_space<vmem>>) attributes {dimension_semantics = [#tpu.dimension_semantics<parallel>, #tpu.dimension_semantics<parallel>, #tpu.dimension_semantics<arbitrary>], iteration_bounds = array<i64: 1, 1, 1>, scalar_prefetch = 0 : i64, scratch_operands = 0 : i64, tpu.core_type = #tpu.core_type<tc>, window_params = [{transform_indices = @transform_0, window_bounds = array<i64: 16, 32>}, {transform_indices = @transform_1, window_bounds = array<i64: 32, 16>}, {transform_indices = @transform_2, window_bounds = array<i64: 1, 16>}, {transform_indices = @transform_3, window_bounds = array<i64: 16, 16>}]} {
    %c0_i32 = arith.constant 0 : i32
    %0 = arith.cmpi eq, %arg2, %c0_i32 : i32
    %1 = arith.extui %0 : i1 to i32
    %c0_i32_0 = arith.constant 0 : i32
    %2 = arith.cmpi ne, %1, %c0_i32_0 : i32
    scf.if %2 {
      %c0_8 = arith.constant 0 : index
      %c0_9 = arith.constant 0 : index
      %9 = vector.load %arg5[%c0_8, %c0_9] : memref<1x16xf32, #tpu.memory_space<vmem>>, vector<1x16xf32>
      %10 = vector.shape_cast %9 : vector<1x16xf32> to vector<1x16xf32>
      %11 = vector.broadcast %10 : vector<1x16xf32> to vector<16x16xf32>
      %c0_10 = arith.constant 0 : index
      %c0_11 = arith.constant 0 : index
      %12 = vector.load %arg6[%c0_10, %c0_11] : memref<16x16xf32, #tpu.memory_space<vmem>>, vector<16x16xf32>
      tpu.vector_store %arg6[%c0_10, %c0_11], %11 {strides = array<i32>} : memref<16x16xf32, #tpu.memory_space<vmem>>, vector<16x16xf32>,
    } else {
    }
    %c0 = arith.constant 0 : index
    %c0_1 = arith.constant 0 : index
    %3 = vector.load %arg3[%c0, %c0_1] : memref<16x32xf32, #tpu.memory_space<vmem>>, vector<16x32xf32>
    %c0_2 = arith.constant 0 : index
    %c0_3 = arith.constant 0 : index
    %4 = vector.load %arg4[%c0_2, %c0_3] : memref<32x16xf32, #tpu.memory_space<vmem>>, vector<32x16xf32>
    %cst = arith.constant dense<0.000000e+00> : vector<16x16xf32>
    %5 = tpu.matmul %3, %4, %cst {dimension_numbers = #tpu.dot_dimension_numbers<[1], [0], [0], [1], [0, 0, 1, 1], [], []>} : vector<16x32xf32>, vector<32x16xf32>, vector<16x16xf32> -> vector<16x16xf32>
    %c0_4 = arith.constant 0 : index
    %c0_5 = arith.constant 0 : index
    %6 = vector.load %arg6[%c0_4, %c0_5] : memref<16x16xf32, #tpu.memory_space<vmem>>, vector<16x16xf32>
    %7 = arith.addf %6, %5 : vector<16x16xf32>
    %c0_6 = arith.constant 0 : index
    %c0_7 = arith.constant 0 : index
    %8 = vector.load %arg6[%c0_6, %c0_7] : memref<16x16xf32, #tpu.memory_space<vmem>>, vector<16x16xf32>
    tpu.vector_store %arg6[%c0_6, %c0_7], %7 {strides = array<i32>} : memref<16x16xf32, #tpu.memory_space<vmem>>, vector<16x16xf32>,
    return
  }
  func.func @transform_0(%arg0: i32, %arg1: i32, %arg2: i32) -> (i32, i32) {
    %c0_i32 = arith.constant 0 : i32
    return %arg0, %arg2 : i32, i32
  }
  func.func @transform_1(%arg0: i32, %arg1: i32, %arg2: i32) -> (i32, i32) {
    %c0_i32 = arith.constant 0 : i32
    return %arg2, %arg1 : i32, i32
  }
  func.func @transform_2(%arg0: i32, %arg1: i32, %arg2: i32) -> (i32, i32) {
    %c0_i32 = arith.constant 0 : i32
    %c0_i32_0 = arith.constant 0 : i32
    return %c0_i32, %arg1 : i32, i32
  }
  func.func @transform_3(%arg0: i32, %arg1: i32, %arg2: i32) -> (i32, i32) {
    %c0_i32 = arith.constant 0 : i32
    return %arg0, %arg1 : i32, i32
  }
}

</mosaic_0001>

<llo_original>
// kernel: linear_forward.1
$region0: #{linear_forward.1}
  #allocation0 [shape = 'u32[]', space=smem, size = 0x4, offset = 0x4, fixed_abs, tag = 'smem constant byte address 0x4 - core index']
  #allocation1 [shape = 'u32[144,128]{1,0:T(1,128)}', space=vmem, size = 0x12000, scoped, tag = 'internal scratch']
  %s0 = inlined_call_operand.vmem [shape: f32[16,32], index: 0, kind: input, shape index: {}]
  %s1 = inlined_call_operand.vmem [shape: f32[32,16], index: 1, kind: input, shape index: {}]
  %s2 = inlined_call_operand.vmem [shape: f32[1,16], index: 2, kind: input, shape index: {}]
  %s3 = inlined_call_operand.hbm [shape: f32[16,16], index: 3, kind: output, shape index: {}]
  %s4 = sld [smem:[#allocation0]]
  $region26: #{linear_forward.1} parent=0
    _
  %s6 = ssub.s32 1, %s4
  %s7 = scalar_select 0, %s6, %s4
  $region1: #{linear_forward.1} parent=0
    #allocation2 [shape = 'u8[8192]{0}', space=vmem, size = 0x2000, scoped, tag = 'output window, operand 0, single buffered']
    #allocation3 [shape = 's32[1]{0}', space=sflag, size = 0x4, scoped, tag = 'scoped memory for linear_forward.1']
    %8 = vsyncpa [#allocation3], 0
    // Predicated region
    $region2: #{linear_forward.1} parent=1 // pred_check
      _
    $region3: #{linear_forward.1} parent=1 // pred_check_branch
      %10 = sbr.rel (0) target = $region5
    $region4: #{linear_forward.1} parent=1 // pred_region
      _
    $region5: #{linear_forward.1} parent=1 // pred_fallthru
      _
    // Predicated region
    $region6: #{linear_forward.1} parent=1 // pred_check
      _
    $region7: #{linear_forward.1} parent=1 // pred_check_branch
      %12 = sbr.rel (0) target = $region9
    $region8: #{linear_forward.1} parent=1 // pred_region
      _
    $region9: #{linear_forward.1} parent=1 // pred_fallthru
      _
    // Predicated region
    $region10: #{linear_forward.1} parent=1 // pred_check
      _
    $region11: #{linear_forward.1} parent=1 // pred_check_branch
      %14 = sbr.rel (0) target = $region13
    $region12: #{linear_forward.1} parent=1 // pred_region
      _
    $region13: #{linear_forward.1} parent=1 // pred_fallthru
      _
    %p15 = scmp.eq.s32.totalorder 0, 0
    // Predicated region
    $region14: #{linear_forward.1} parent=1 // pred_check
      %p16 = pneg %p15
    $region15: #{linear_forward.1} parent=1 // pred_check_branch
      %18 = sbr.rel (%p16) target = $region17
    $region16: #{linear_forward.1} parent=1 // pred_region
      %v19 = vld [vmem:[%s2] sm:$0x1]
      %v21 = vlaneseq
      %v22 = vshrl.u32 %v21, 7
      %v23 = vsub.s32 0, %v22
      %v24 = vrot.slane %v19, %v23
      %vm26 = vcmask 130048
      %27 = vst.msk [vmem:[#allocation2] sm:$0xff] %vm26, %v24
      %28 = vst.msk [vmem:[#allocation2 + $0x8] sm:$0xff] %vm26, %v24
    $region17: #{linear_forward.1} parent=1 // pred_fallthru
      _
    %v29 = vld [vmem:[%s0] sm:$0xff]
    %v30 = vld [vmem:[%s0 + $0x8] sm:$0xff]
    %v31 = vld [vmem:[%s1] sm:$0xff]
    %v32 = vld [vmem:[%s1 + $0x8] sm:$0xff]
    %v33 = vld [vmem:[%s1 + $0x10] sm:$0xff]
    %v34 = vld [vmem:[%s1 + $0x18] sm:$0xff]
    %vm35 = vcmask 261120
    %v37 = vsel %vm35, %v29, 0
    %v40 = vsel %vm35, %v30, 0
    %42 = vmatprep.subr.mxu0 0.0
    %43 = vmatpush1.msra.mxu0 %v31
    %44 = vmatprep.subr.mxu0 0.0
    %45 = vmatpush1.msra.mxu0 %v32
    %46 = vmatprep.subr.mxu0 0.0
    %47 = vmatpush1.msra.mxu0 %v33
    %48 = vmatprep.subr.mxu0 0.0
    %49 = vmatpush1.msra.mxu0 %v34
    %50 = vmatprep.subr.mxu0 0.0
    %51 = vmatpush1.msra.mxu0 0.0
    %52 = vmatprep.subr.mxu0 0.0
    %53 = vmatpush1.msra.mxu0 0.0
    %54 = vmatprep.subr.mxu0 0.0
    %55 = vmatpush1.msra.mxu0 0.0
    %56 = vmatprep.subr.mxu0 0.0
    %57 = vmatpush1.msra.mxu0 0.0
    %58 = vmatprep.subr.mxu0 0.0
    %59 = vmatpush1.msra.mxu0 0.0
    %60 = vmatprep.subr.mxu0 0.0
    %61 = vmatpush1.msra.mxu0 0.0
    %62 = vmatprep.subr.mxu0 0.0
    %63 = vmatpush1.msra.mxu0 0.0
    %64 = vmatprep.subr.mxu0 0.0
    %65 = vmatpush1.msra.mxu0 0.0
    %66 = vmatprep.subr.mxu0 0.0
    %67 = vmatpush1.msra.mxu0 0.0
    %68 = vmatprep.subr.mxu0 0.0
    %69 = vmatpush1.msra.mxu0 0.0
    %70 = vmatprep.subr.mxu0 0.0
    %71 = vmatpush1.msra.mxu0 0.0
    %72 = vmatprep.subr.mxu0 0.0
    %73 = vmatpush1.msra.mxu0 0.0
    %74 = vmatprep.subr.mxu0 0.0
    %75 = vmatpush1.msra.mxu0 0.0
    %76 = vmatprep.subr.mxu0 0.0
    %77 = vmatpush1.msra.mxu0 0.0
    %78 = vmatprep.subr.mxu0 0.0
    %79 = vmatpush1.msra.mxu0 0.0
    %80 = vmatprep.subr.mxu0 0.0
    %81 = vmatpush1.msra.mxu0 0.0
    %82 = vmatprep.subr.mxu0 0.0
    %83 = vmatpush1.msra.mxu0 0.0
    %84 = vmatprep.subr.mxu0 0.0
    %85 = vmatpush1.msra.mxu0 0.0
    %86 = vmatprep.subr.mxu0 0.0
    %87 = vmatpush1.msra.mxu0 0.0
    %88 = vmatprep.subr.mxu0 0.0
    %89 = vmatpush1.msra.mxu0 0.0
    %90 = vmatprep.subr.mxu0 0.0
    %91 = vmatpush1.msra.mxu0 0.0
    %92 = vmatprep.subr.mxu0 0.0
    %93 = vmatpush1.msra.mxu0 0.0
    %94 = vmatprep.subr.mxu0 0.0
    %95 = vmatpush1.msra.mxu0 0.0
    %96 = vmatprep.subr.mxu0 0.0
    %97 = vmatpush1.msra.mxu0 0.0
    %98 = vmatprep.subr.mxu0 0.0
    %99 = vmatpush1.msra.mxu0 0.0
    %100 = vmatprep.subr.mxu0 0.0
    %101 = vmatpush1.msra.mxu0 0.0
    %102 = vmatprep.subr.mxu0 0.0
    %103 = vmatpush1.msra.mxu0 0.0
    %104 = vmatprep.subr.mxu0 0.0
    %105 = vmatpush1.msra.mxu0 0.0
    %106 = vmatprep.mubr.f32.mxu0 0.0
    %107 = vmatmul.mubr.f32.gmra.mrb[0].mxu0 %v37
    %v108 = vpop.f32.mrb[0].mxu0
    %v109 = vadd.f32 0.0, %v108
    %v110 = vpop.f32.mrb[0].mxu0
    %111 = vmatprep.mubr.f32.mxu0 0.0
    %112 = vmatmul.mubr.f32.gmra.mrb[0].mxu0 %v40
    %v113 = vpop.f32.mrb[0].mxu0
    %v114 = vadd.f32 0.0, %v113
    %v115 = vpop.f32.mrb[0].mxu0
    %116 = vdwg.mxu0
    %v117 = vld [vmem:[#allocation2] sm:$0xff]
    %v118 = vld [vmem:[#allocation2 + $0x8] sm:$0xff]
    %v119 = vadd.f32 %v117, %v109
    %v120 = vadd.f32 %v118, %v114
    %vm121 = vcmask 130048
    %122 = vst.msk [vmem:[#allocation2] sm:$0xff] %vm121, %v119
    %123 = vst.msk [vmem:[#allocation2 + $0x8] sm:$0xff] %vm121, %v120
    // Predicated region
    $region18: #{linear_forward.1} parent=1 // pred_check
      _
    $region19: #{linear_forward.1} parent=1 // pred_check_branch
      %125 = sbr.rel (0) target = $region21
    $region20: #{linear_forward.1} parent=1 // pred_region
      %s127 = ssub.s32 256, 256
      %128 = vsyncadd [#allocation3], %s127
      %s129 = sshll.u32 [#allocation2], 4
      %s130 = int_to_ptr.vmem [resolvable:$true] %s129
      %135 = dma.vmem_to_hbm [thread:$0]  %s130, 256, %s3, [#allocation3], 128, 128, 8
    $region21: #{linear_forward.1} parent=1 // pred_fallthru
      _
    // Predicated region
    $region22: #{linear_forward.1} parent=1 // pred_check
      _
    $region23: #{linear_forward.1} parent=1 // pred_check_branch
      %137 = sbr.rel (0) target = $region25
    $region24: #{linear_forward.1} parent=1 // pred_region
      %138 = dma.done [#allocation3], 256
    $region25: #{linear_forward.1} parent=1 // pred_fallthru
      _
    %139 = vsyncpa [#allocation3], 1

</llo_original>
